<compile_context>
chip_gen: v6e
topology: v6e:2x2x1
jax: 0.10.0
libtpu: 0.0.40
codegen_flags: <defaults>
</compile_context>

<pallas_src>
import functools

import jax
import jax.numpy as jnp
from jax.experimental import pallas as pl
from jax.experimental.pallas import tpu as pltpu


def _round_up(x, m):
    return ((x + m - 1) // m) * m


def _edge_score_kernel(src_ref, dst_ref, out_ref):
    # src_ref, dst_ref: (TILE_E, D) row-major VMEM tiles (edges on sublanes,
    # features on lanes).  out_ref: (TILE_E, 1) per-edge scores (contiguous
    # slab of the (E_pad, 1) output -> cheap HBM writeback).
    s = src_ref[...].astype(jnp.float32)
    d = dst_ref[...].astype(jnp.float32)
    out_ref[...] = jnp.sum(s * d, axis=1, keepdims=True).astype(out_ref.dtype)


def _vmem_capacity_bytes():
    try:
        return int(pltpu.get_tpu_info().vmem_capacity_bytes)
    except Exception:
        return 64 << 20  # conservative: v7x per-TensorCore VMEM


def _vmem_budgets():
    # Generation-aware: 128 MiB on v5e/v6e, 64 MiB on v7x.
    cap = _vmem_capacity_bytes()
    vmem_limit = max(32 << 20, min(cap - (16 << 20), 96 << 20))  # leave headroom
    working_set = vmem_limit // 2  # for 2 inputs x 2 pipeline buffers
    return working_set, vmem_limit


def _choose_tile_e(E, D, itemsize, requested, working_set_bytes):
    """Lane-aligned edge tile: 2 inputs x 2 pipeline buffers fit the VMEM budget."""
    # Per-edge VMEM bytes of one input row (minor dim lane-pads to 128 in VMEM).
    row_bytes = _round_up(max(D, 1), 128) * itemsize
    cap = working_set_bytes // (4 * row_bytes)
    cap = max(128, (cap // 128) * 128)
    tile = max(128, min(requested, cap))
    # Keep >= 2 grid steps for moderate E (both v7x TensorCores get work) and
    # never pad a tiny edge list up to a huge tile.
    min_steps = 2 if E >= 256 else 1
    tile = min(tile, max(128, _round_up((E + min_steps - 1) // min_steps, 128)))
    return tile


def _edge_scores(src_rows, dst_rows, tile_e, vmem_limit_bytes):
    """(src_rows * dst_rows).sum(axis=1) over row-major (E_pad, D) arrays, tiled over edges."""
    E_pad, D = src_rows.shape
    assert E_pad % tile_e == 0
    out = pl.pallas_call(
        _edge_score_kernel,
        out_shape=jax.ShapeDtypeStruct((E_pad, 1), jnp.float32),
        grid_spec=pltpu.PrefetchScalarGridSpec(
            num_scalar_prefetch=0,
            grid=(E_pad // tile_e,),
            in_specs=[
                pl.BlockSpec((tile_e, D), lambda i: (i, 0)),  # gathered src features
                pl.BlockSpec((tile_e, D), lambda i: (i, 0)),  # gathered dst features
            ],
            out_specs=pl.BlockSpec((tile_e, 1), lambda i: (i, 0)),
        ),
        compiler_params=pltpu.CompilerParams(
            dimension_semantics=("parallel",),  # shard edge tiles across v7x's 2 TCs
            vmem_limit_bytes=vmem_limit_bytes,
        ),
    )(src_rows, dst_rows)
    return out[:, 0]


@functools.partial(jax.jit, static_argnames=("tile_e", "stream_dtype"))
def bilinear_decoder_forward(z_src, z_dst, M, src_idx, dst_idx,
                             tile_e=8192, stream_dtype=None):
    """Compute (z_src[src_idx] @ M * z_dst[dst_idx]).sum(-1)  ->  (E,) float32."""
    E = src_idx.shape[0]
    D = z_src.shape[1]

    # Node-level precompute: (z @ M)[src] == z[src] @ M  (N*D^2 flops, not E*D^2).
    # NOTE: with stream_dtype=bf16 the z@M result is rounded before the per-edge
    # dot (small deviation from the f32 reference); default keeps the input dtype.
    stream_dt = jnp.dtype(stream_dtype) if stream_dtype is not None else jnp.dtype(z_src.dtype)
    zM = jnp.dot(z_src, M, preferred_element_type=jnp.float32).astype(stream_dt)
    zd = z_dst.astype(stream_dt)

    working_set, vmem_limit = _vmem_budgets()
    tile = _choose_tile_e(E, D, stream_dt.itemsize, requested=tile_e,
                          working_set_bytes=working_set)
    pad = (-E) % tile
    if pad:
        # Pad only the cheap int32 index vectors (padded rows gather node 0 and
        # are sliced off below) -- the (E, D) features never see an extra HBM pass.
        zeros = jnp.zeros((pad,), dtype=src_idx.dtype)
        src_idx = jnp.concatenate([src_idx, zeros])
        dst_idx = jnp.concatenate([dst_idx, zeros])

    # Row-major (contiguous) gathers: (E_pad, D), features on the lane axis.
    src_rows = jnp.take(zM, src_idx, axis=0)
    dst_rows = jnp.take(zd, dst_idx, axis=0)

    scores = _edge_scores(src_rows, dst_rows, tile_e=tile, vmem_limit_bytes=vmem_limit)
    return scores[:E]


class BilinearDecoder:
    """JAX/Pallas port of the PyTorch BilinearDecoder."""

    def __init__(self, dim, relations, key):
        self.dim = dim
        self.M = {}
        bound = (6.0 / (dim + dim)) ** 0.5  # xavier_uniform_ bound
        for i, relation in enumerate(relations):
            k = jax.random.fold_in(key, i)
            self.M[relation] = jax.random.uniform(
                k, (dim, dim), dtype=jnp.float32, minval=-bound, maxval=bound
            )

    def __call__(self, z, edge_index, relation, tile_e=8192, stream_dtype=None):
        if isinstance(z, tuple):
            z_src, z_dst = z[0], z[1]
        else:
            z_src = z_dst = z
        return bilinear_decoder_forward(
            z_src, z_dst, self.M[relation], edge_index[0], edge_index[1],
            tile_e=tile_e, stream_dtype=stream_dtype,
        )


if __name__ == "__main__":
    key = jax.random.PRNGKey(0)
    dim = 32
    num_nodes = 64
    num_edges = 200  # deliberately not a multiple of 128 -> exercises index padding
    relations = ["rel_a", "rel_b"]

    k_z, k_e0, k_e1, k_m = jax.random.split(key, 4)
    z = jax.random.normal(k_z, (num_nodes, dim), dtype=jnp.float32)
    edge_index = jnp.stack(
        [
            jax.random.randint(k_e0, (num_edges,), 0, num_nodes),
            jax.random.randint(k_e1, (num_edges,), 0, num_nodes),
        ],
        axis=0,
    )

    decoder = BilinearDecoder(dim, relations, k_m)

    out = decoder(z, edge_index, "rel_a")
    out = jax.block_until_ready(out)

    # Reference check in plain JAX (matches the PyTorch forward).
    src_ref = z[edge_index[0]]
    dst_ref = z[edge_index[1]]
    ref = jnp.sum((src_ref @ decoder.M["rel_a"]) * dst_ref, axis=1)
    assert out.shape == (num_edges,)
    assert jnp.allclose(out, ref, atol=1e-4, rtol=1e-4), "mismatch vs reference"

    # Also exercise the bf16 streaming path (halved HBM traffic, f32 accumulation).
    out_bf16 = jax.block_until_ready(
        decoder(z, edge_index, "rel_a", stream_dtype=jnp.bfloat16)
    )
    assert out_bf16.shape == (num_edges,)
    assert jnp.allclose(out_bf16, ref, atol=2.5e-1, rtol=5e-2), "bf16 path mismatch"

    print("KERNEL_OK")
</pallas_src>

<mosaic_0001>
module attributes {stable_mosaic.version = 11 : i64} {
  func.func @_edge_score_kernel(%arg0: i32, %arg1: memref<256x32xf32, #tpu.memory_space<vmem>>, %arg2: memref<256x32xf32, #tpu.memory_space<vmem>>, %arg3: memref<256x1xf32, #tpu.memory_space<vmem>>) attributes {dimension_semantics = [#tpu.dimension_semantics<parallel>], iteration_bounds = array<i64: 1>, scalar_prefetch = 0 : i64, scratch_operands = 0 : i64, tpu.core_type = #tpu.core_type<tc>, window_params = [{transform_indices = @transform_0, window_bounds = array<i64: 256, 32>}, {transform_indices = @transform_1, window_bounds = array<i64: 256, 32>}, {transform_indices = @transform_2, window_bounds = array<i64: 256, 1>}]} {
    %c0 = arith.constant 0 : index
    %c0_0 = arith.constant 0 : index
    %0 = vector.load %arg1[%c0, %c0_0] : memref<256x32xf32, #tpu.memory_space<vmem>>, vector<256x32xf32>
    %c0_1 = arith.constant 0 : index
    %c0_2 = arith.constant 0 : index
    %1 = vector.load %arg2[%c0_1, %c0_2] : memref<256x32xf32, #tpu.memory_space<vmem>>, vector<256x32xf32>
    %2 = arith.mulf %0, %1 : vector<256x32xf32>
    %cst = arith.constant dense<0.000000e+00> : vector<256xf32>
    %3 = vector.multi_reduction <add>, %2, %cst [1] : vector<256x32xf32> to vector<256xf32>
    %4 = vector.shape_cast %3 : vector<256xf32> to vector<256x1xf32>
    %c0_3 = arith.constant 0 : index
    %c0_4 = arith.constant 0 : index
    %5 = vector.load %arg3[%c0_3, %c0_4] : memref<256x1xf32, #tpu.memory_space<vmem>>, vector<256x1xf32>
    tpu.vector_store %arg3[%c0_3, %c0_4], %4 {strides = array<i32>} : memref<256x1xf32, #tpu.memory_space<vmem>>, vector<256x1xf32>,
    return
  }
  func.func @transform_0(%arg0: i32) -> (i32, i32) {
    %c0_i32 = arith.constant 0 : i32
    %c0_i32_0 = arith.constant 0 : i32
    return %arg0, %c0_i32 : i32, i32
  }
  func.func @transform_1(%arg0: i32) -> (i32, i32) {
    %c0_i32 = arith.constant 0 : i32
    %c0_i32_0 = arith.constant 0 : i32
    return %arg0, %c0_i32 : i32, i32
  }
  func.func @transform_2(%arg0: i32) -> (i32, i32) {
    %c0_i32 = arith.constant 0 : i32
    %c0_i32_0 = arith.constant 0 : i32
    return %arg0, %c0_i32 : i32, i32
  }
}

</mosaic_0001>

<llo_original>
// kernel: bilinear_decoder_forward.1
$region0: #{bilinear_decoder_forward.1}
  #allocation0 [shape = 'u32[]', space=smem, size = 0x4, offset = 0x4, fixed_abs, tag = 'smem constant byte address 0x4 - core index']
  #allocation1 [shape = 'u32[144,128]{1,0:T(1,128)}', space=vmem, size = 0x12000, scoped, tag = 'internal scratch']
  %s0 = inlined_call_operand.vmem [shape: f32[256,32], index: 0, kind: input, shape index: {}]
  %s1 = inlined_call_operand.vmem [shape: f32[256,32], index: 1, kind: input, shape index: {}]
  %s2 = inlined_call_operand.vmem [shape: f32[256,1], index: 2, kind: output, shape index: {}]
  %s3 = sld [smem:[#allocation0]]
  $region18: #{bilinear_decoder_forward.1} parent=0
    _
  %s5 = ssub.s32 1, %s3
  %s6 = scalar_select 0, %s5, %s3
  // Predicated region
  $region2: #{bilinear_decoder_forward.1} parent=0 // pred_check
    _
  $region3: #{bilinear_decoder_forward.1} parent=0 // pred_check_branch
    %8 = sbr.rel (0) target = $region5
  $region4: #{bilinear_decoder_forward.1} parent=0 // pred_region
    _
  $region5: #{bilinear_decoder_forward.1} parent=0 // pred_fallthru
    _
  // Predicated region
  $region6: #{bilinear_decoder_forward.1} parent=0 // pred_check
    _
  $region7: #{bilinear_decoder_forward.1} parent=0 // pred_check_branch
    %10 = sbr.rel (0) target = $region9
  $region8: #{bilinear_decoder_forward.1} parent=0 // pred_region
    _
  $region9: #{bilinear_decoder_forward.1} parent=0 // pred_fallthru
    _
  %v11 = vld [vmem:[%s0] sm:$0xff]
  %v12 = vld [vmem:[%s0 + $0x8] sm:$0xff]
  %v13 = vld [vmem:[%s0 + $0x10] sm:$0xff]
  %v14 = vld [vmem:[%s0 + $0x18] sm:$0xff]
  %v15 = vld [vmem:[%s0 + $0x20] sm:$0xff]
  %v16 = vld [vmem:[%s0 + $0x28] sm:$0xff]
  %v17 = vld [vmem:[%s0 + $0x30] sm:$0xff]
  %v18 = vld [vmem:[%s0 + $0x38] sm:$0xff]
  %v19 = vld [vmem:[%s0 + $0x40] sm:$0xff]
  %v20 = vld [vmem:[%s0 + $0x48] sm:$0xff]
  %v21 = vld [vmem:[%s0 + $0x50] sm:$0xff]
  %v22 = vld [vmem:[%s0 + $0x58] sm:$0xff]
  %v23 = vld [vmem:[%s0 + $0x60] sm:$0xff]
  %v24 = vld [vmem:[%s0 + $0x68] sm:$0xff]
  %v25 = vld [vmem:[%s0 + $0x70] sm:$0xff]
  %v26 = vld [vmem:[%s0 + $0x78] sm:$0xff]
  %v27 = vld [vmem:[%s0 + $0x80] sm:$0xff]
  %v28 = vld [vmem:[%s0 + $0x88] sm:$0xff]
  %v29 = vld [vmem:[%s0 + $0x90] sm:$0xff]
  %v30 = vld [vmem:[%s0 + $0x98] sm:$0xff]
  %v31 = vld [vmem:[%s0 + $0xa0] sm:$0xff]
  %v32 = vld [vmem:[%s0 + $0xa8] sm:$0xff]
  %v33 = vld [vmem:[%s0 + $0xb0] sm:$0xff]
  %v34 = vld [vmem:[%s0 + $0xb8] sm:$0xff]
  %v35 = vld [vmem:[%s0 + $0xc0] sm:$0xff]
  %v36 = vld [vmem:[%s0 + $0xc8] sm:$0xff]
  %v37 = vld [vmem:[%s0 + $0xd0] sm:$0xff]
  %v38 = vld [vmem:[%s0 + $0xd8] sm:$0xff]
  %v39 = vld [vmem:[%s0 + $0xe0] sm:$0xff]
  %v40 = vld [vmem:[%s0 + $0xe8] sm:$0xff]
  %v41 = vld [vmem:[%s0 + $0xf0] sm:$0xff]
  %v42 = vld [vmem:[%s0 + $0xf8] sm:$0xff]
  %v43 = vld [vmem:[%s1] sm:$0xff]
  %v44 = vld [vmem:[%s1 + $0x8] sm:$0xff]
  %v45 = vld [vmem:[%s1 + $0x10] sm:$0xff]
  %v46 = vld [vmem:[%s1 + $0x18] sm:$0xff]
  %v47 = vld [vmem:[%s1 + $0x20] sm:$0xff]
  %v48 = vld [vmem:[%s1 + $0x28] sm:$0xff]
  %v49 = vld [vmem:[%s1 + $0x30] sm:$0xff]
  %v50 = vld [vmem:[%s1 + $0x38] sm:$0xff]
  %v51 = vld [vmem:[%s1 + $0x40] sm:$0xff]
  %v52 = vld [vmem:[%s1 + $0x48] sm:$0xff]
  %v53 = vld [vmem:[%s1 + $0x50] sm:$0xff]
  %v54 = vld [vmem:[%s1 + $0x58] sm:$0xff]
  %v55 = vld [vmem:[%s1 + $0x60] sm:$0xff]
  %v56 = vld [vmem:[%s1 + $0x68] sm:$0xff]
  %v57 = vld [vmem:[%s1 + $0x70] sm:$0xff]
  %v58 = vld [vmem:[%s1 + $0x78] sm:$0xff]
  %v59 = vld [vmem:[%s1 + $0x80] sm:$0xff]
  %v60 = vld [vmem:[%s1 + $0x88] sm:$0xff]
  %v61 = vld [vmem:[%s1 + $0x90] sm:$0xff]
  %v62 = vld [vmem:[%s1 + $0x98] sm:$0xff]
  %v63 = vld [vmem:[%s1 + $0xa0] sm:$0xff]
  %v64 = vld [vmem:[%s1 + $0xa8] sm:$0xff]
  %v65 = vld [vmem:[%s1 + $0xb0] sm:$0xff]
  %v66 = vld [vmem:[%s1 + $0xb8] sm:$0xff]
  %v67 = vld [vmem:[%s1 + $0xc0] sm:$0xff]
  %v68 = vld [vmem:[%s1 + $0xc8] sm:$0xff]
  %v69 = vld [vmem:[%s1 + $0xd0] sm:$0xff]
  %v70 = vld [vmem:[%s1 + $0xd8] sm:$0xff]
  %v71 = vld [vmem:[%s1 + $0xe0] sm:$0xff]
  %v72 = vld [vmem:[%s1 + $0xe8] sm:$0xff]
  %v73 = vld [vmem:[%s1 + $0xf0] sm:$0xff]
  %v74 = vld [vmem:[%s1 + $0xf8] sm:$0xff]
  %v75 = vmul.f32 %v11, %v43
  %v76 = vmul.f32 %v12, %v44
  %v77 = vmul.f32 %v13, %v45
  %v78 = vmul.f32 %v14, %v46
  %v79 = vmul.f32 %v15, %v47
  %v80 = vmul.f32 %v16, %v48
  %v81 = vmul.f32 %v17, %v49
  %v82 = vmul.f32 %v18, %v50
  %v83 = vmul.f32 %v19, %v51
  %v84 = vmul.f32 %v20, %v52
  %v85 = vmul.f32 %v21, %v53
  %v86 = vmul.f32 %v22, %v54
  %v87 = vmul.f32 %v23, %v55
  %v88 = vmul.f32 %v24, %v56
  %v89 = vmul.f32 %v25, %v57
  %v90 = vmul.f32 %v26, %v58
  %v91 = vmul.f32 %v27, %v59
  %v92 = vmul.f32 %v28, %v60
  %v93 = vmul.f32 %v29, %v61
  %v94 = vmul.f32 %v30, %v62
  %v95 = vmul.f32 %v31, %v63
  %v96 = vmul.f32 %v32, %v64
  %v97 = vmul.f32 %v33, %v65
  %v98 = vmul.f32 %v34, %v66
  %v99 = vmul.f32 %v35, %v67
  %v100 = vmul.f32 %v36, %v68
  %v101 = vmul.f32 %v37, %v69
  %v102 = vmul.f32 %v38, %v70
  %v103 = vmul.f32 %v39, %v71
  %v104 = vmul.f32 %v40, %v72
  %v105 = vmul.f32 %v41, %v73
  %v106 = vmul.f32 %v42, %v74
  %vm107 = vcmask 261120
  %v108 = vsel %vm107, %v75, 0.0
  %109 = vadd.xlane.f32.xlu0 %v108
  %v110 = vpop.xlane.xlu0 %109
  %v111 = vsel %vm107, %v76, 0.0
  %112 = vadd.xlane.f32.xlu0 %v111
  %v113 = vpop.xlane.xlu0 %112
  %v114 = vsel %vm107, %v77, 0.0
  %115 = vadd.xlane.f32.xlu0 %v114
  %v116 = vpop.xlane.xlu0 %115
  %v117 = vsel %vm107, %v78, 0.0
  %118 = vadd.xlane.f32.xlu0 %v117
  %v119 = vpop.xlane.xlu0 %118
  %v120 = vsel %vm107, %v79, 0.0
  %121 = vadd.xlane.f32.xlu0 %v120
  %v122 = vpop.xlane.xlu0 %121
  %v123 = vsel %vm107, %v80, 0.0
  %124 = vadd.xlane.f32.xlu0 %v123
  %v125 = vpop.xlane.xlu0 %124
  %v126 = vsel %vm107, %v81, 0.0
  %127 = vadd.xlane.f32.xlu0 %v126
  %v128 = vpop.xlane.xlu0 %127
  %v129 = vsel %vm107, %v82, 0.0
  %130 = vadd.xlane.f32.xlu0 %v129
  %v131 = vpop.xlane.xlu0 %130
  %v132 = vsel %vm107, %v83, 0.0
  %133 = vadd.xlane.f32.xlu0 %v132
  %v134 = vpop.xlane.xlu0 %133
  %v135 = vsel %vm107, %v84, 0.0
  %136 = vadd.xlane.f32.xlu0 %v135
  %v137 = vpop.xlane.xlu0 %136
  %v138 = vsel %vm107, %v85, 0.0
  %139 = vadd.xlane.f32.xlu0 %v138
  %v140 = vpop.xlane.xlu0 %139
  %v141 = vsel %vm107, %v86, 0.0
  %142 = vadd.xlane.f32.xlu0 %v141
  %v143 = vpop.xlane.xlu0 %142
  %v144 = vsel %vm107, %v87, 0.0
  %145 = vadd.xlane.f32.xlu0 %v144
  %v146 = vpop.xlane.xlu0 %145
  %v147 = vsel %vm107, %v88, 0.0
  %148 = vadd.xlane.f32.xlu0 %v147
  %v149 = vpop.xlane.xlu0 %148
  %v150 = vsel %vm107, %v89, 0.0
  %151 = vadd.xlane.f32.xlu0 %v150
  %v152 = vpop.xlane.xlu0 %151
  %v153 = vsel %vm107, %v90, 0.0
  %154 = vadd.xlane.f32.xlu0 %v153
  %v155 = vpop.xlane.xlu0 %154
  %v156 = vsel %vm107, %v91, 0.0
  %157 = vadd.xlane.f32.xlu0 %v156
  %v158 = vpop.xlane.xlu0 %157
  %v159 = vsel %vm107, %v92, 0.0
  %160 = vadd.xlane.f32.xlu0 %v159
  %v161 = vpop.xlane.xlu0 %160
  %v162 = vsel %vm107, %v93, 0.0
  %163 = vadd.xlane.f32.xlu0 %v162
  %v164 = vpop.xlane.xlu0 %163
  %v165 = vsel %vm107, %v94, 0.0
  %166 = vadd.xlane.f32.xlu0 %v165
  %v167 = vpop.xlane.xlu0 %166
  %v168 = vsel %vm107, %v95, 0.0
  %169 = vadd.xlane.f32.xlu0 %v168
  %v170 = vpop.xlane.xlu0 %169
  %v171 = vsel %vm107, %v96, 0.0
  %172 = vadd.xlane.f32.xlu0 %v171
  %v173 = vpop.xlane.xlu0 %172
  %v174 = vsel %vm107, %v97, 0.0
  %175 = vadd.xlane.f32.xlu0 %v174
  %v176 = vpop.xlane.xlu0 %175
  %v177 = vsel %vm107, %v98, 0.0
  %178 = vadd.xlane.f32.xlu0 %v177
  %v179 = vpop.xlane.xlu0 %178
  %v180 = vsel %vm107, %v99, 0.0
  %181 = vadd.xlane.f32.xlu0 %v180
  %v182 = vpop.xlane.xlu0 %181
  %v183 = vsel %vm107, %v100, 0.0
  %184 = vadd.xlane.f32.xlu0 %v183
  %v185 = vpop.xlane.xlu0 %184
  %v186 = vsel %vm107, %v101, 0.0
  %187 = vadd.xlane.f32.xlu0 %v186
  %v188 = vpop.xlane.xlu0 %187
  %v189 = vsel %vm107, %v102, 0.0
  %190 = vadd.xlane.f32.xlu0 %v189
  %v191 = vpop.xlane.xlu0 %190
  %v192 = vsel %vm107, %v103, 0.0
  %193 = vadd.xlane.f32.xlu0 %v192
  %v194 = vpop.xlane.xlu0 %193
  %v195 = vsel %vm107, %v104, 0.0
  %196 = vadd.xlane.f32.xlu0 %v195
  %v197 = vpop.xlane.xlu0 %196
  %v198 = vsel %vm107, %v105, 0.0
  %199 = vadd.xlane.f32.xlu0 %v198
  %v200 = vpop.xlane.xlu0 %199
  %v201 = vsel %vm107, %v106, 0.0
  %202 = vadd.xlane.f32.xlu0 %v201
  %v203 = vpop.xlane.xlu0 %202
  %vm204 = vcmask 7168
  %205 = vst.msk [vmem:[%s2] sm:$0xff] %vm204, %v110
  %206 = vst.msk [vmem:[%s2 + $0x8] sm:$0xff] %vm204, %v113
  %207 = vst.msk [vmem:[%s2 + $0x10] sm:$0xff] %vm204, %v116
  %208 = vst.msk [vmem:[%s2 + $0x18] sm:$0xff] %vm204, %v119
  %209 = vst.msk [vmem:[%s2 + $0x20] sm:$0xff] %vm204, %v122
  %210 = vst.msk [vmem:[%s2 + $0x28] sm:$0xff] %vm204, %v125
  %211 = vst.msk [vmem:[%s2 + $0x30] sm:$0xff] %vm204, %v128
  %212 = vst.msk [vmem:[%s2 + $0x38] sm:$0xff] %vm204, %v131
  %213 = vst.msk [vmem:[%s2 + $0x40] sm:$0xff] %vm204, %v134
  %214 = vst.msk [vmem:[%s2 + $0x48] sm:$0xff] %vm204, %v137
  %215 = vst.msk [vmem:[%s2 + $0x50] sm:$0xff] %vm204, %v140
  %216 = vst.msk [vmem:[%s2 + $0x58] sm:$0xff] %vm204, %v143
  %217 = vst.msk [vmem:[%s2 + $0x60] sm:$0xff] %vm204, %v146
  %218 = vst.msk [vmem:[%s2 + $0x68] sm:$0xff] %vm204, %v149
  %219 = vst.msk [vmem:[%s2 + $0x70] sm:$0xff] %vm204, %v152
  %220 = vst.msk [vmem:[%s2 + $0x78] sm:$0xff] %vm204, %v155
  %221 = vst.msk [vmem:[%s2 + $0x80] sm:$0xff] %vm204, %v158
  %222 = vst.msk [vmem:[%s2 + $0x88] sm:$0xff] %vm204, %v161
  %223 = vst.msk [vmem:[%s2 + $0x90] sm:$0xff] %vm204, %v164
  %224 = vst.msk [vmem:[%s2 + $0x98] sm:$0xff] %vm204, %v167
  %225 = vst.msk [vmem:[%s2 + $0xa0] sm:$0xff] %vm204, %v170
  %226 = vst.msk [vmem:[%s2 + $0xa8] sm:$0xff] %vm204, %v173
  %227 = vst.msk [vmem:[%s2 + $0xb0] sm:$0xff] %vm204, %v176
  %228 = vst.msk [vmem:[%s2 + $0xb8] sm:$0xff] %vm204, %v179
  %229 = vst.msk [vmem:[%s2 + $0xc0] sm:$0xff] %vm204, %v182
  %230 = vst.msk [vmem:[%s2 + $0xc8] sm:$0xff] %vm204, %v185
  %231 = vst.msk [vmem:[%s2 + $0xd0] sm:$0xff] %vm204, %v188
  %232 = vst.msk [vmem:[%s2 + $0xd8] sm:$0xff] %vm204, %v191
  %233 = vst.msk [vmem:[%s2 + $0xe0] sm:$0xff] %vm204, %v194
  %234 = vst.msk [vmem:[%s2 + $0xe8] sm:$0xff] %vm204, %v197
  %235 = vst.msk [vmem:[%s2 + $0xf0] sm:$0xff] %vm204, %v200
  %236 = vst.msk [vmem:[%s2 + $0xf8] sm:$0xff] %vm204, %v203
  // Predicated region
  $region10: #{bilinear_decoder_forward.1} parent=0 // pred_check
    _
  $region11: #{bilinear_decoder_forward.1} parent=0 // pred_check_branch
    %238 = sbr.rel (0) target = $region13
  $region12: #{bilinear_decoder_forward.1} parent=0 // pred_region
    _
  $region13: #{bilinear_decoder_forward.1} parent=0 // pred_fallthru
    _
  // Predicated region
  $region14: #{bilinear_decoder_forward.1} parent=0 // pred_check
    _
  $region15: #{bilinear_decoder_forward.1} parent=0 // pred_check_branch
    %240 = sbr.rel (0) target = $region17
  $region16: #{bilinear_decoder_forward.1} parent=0 // pred_region
    _
  $region17: #{bilinear_decoder_forward.1} parent=0 // pred_fallthru
    _

</llo_original>
